<compile_context>
chip_gen: v7x
topology: tpu7x:2x2x1
jax: 0.10.0
libtpu: 0.0.40
codegen_flags: <defaults>
</compile_context>

<pallas_src>
import jax
import jax.numpy as jnp
from jax import lax
from jax.experimental import pallas as pl
from jax.experimental.pallas import tpu as pltpu

SHOT_NUM = 8
SIM_CHANNEL = 128
EPS = 1e-8

_TB_MAX = 4096                      # batch-tile cap (keeps tiles multi-MiB, DMA-sized)
_VMEM_X_BUDGET = 16 * 1024 * 1024   # budget for the two double-buffered x tiles
_VMEM_LIMIT_CAP = 48 * 1024 * 1024  # stay well inside v7x's 64 MiB physical VMEM


def _round_up(x, m):
    return ((x + m - 1) // m) * m


def _round_down_mult(x, m):
    return max(m, (x // m) * m)


def _cos_sim_kernel(x_ref, w_ref, b_ref, out_ref):
    # x_ref: (TB, 8*D)  w_ref: (8*D, 2*C) block-diag  b_ref: (1, 2*C)  out_ref: (1, TB)
    # Single MXU matmul over the fused block-diagonal weight (N = 256 fills the
    # MXU on v6e/v7x); accumulate in f32 regardless of the streamed dtype.
    v = jnp.dot(x_ref[...], w_ref[...], preferred_element_type=jnp.float32)
    v = v + b_ref[...].astype(jnp.float32)                 # (TB, 2C) f32

    # One aligned transpose (XLU slot, hidden under the x-tile DMA) so the
    # reductions and the final store are lane-dense (1, TB) rows.
    vt = jnp.transpose(v)                                  # (2C, TB)
    v1 = vt[:SIM_CHANNEL, :]                               # sublane slice @128: aligned
    v2 = vt[SIM_CHANNEL:, :]

    dot = jnp.sum(v1 * v2, axis=0, keepdims=True)          # (1, TB)
    n1sq = jnp.sum(v1 * v1, axis=0, keepdims=True)
    n2sq = jnp.sum(v2 * v2, axis=0, keepdims=True)

    # torch parity: dot / (max(||v1||,eps) * max(||v2||,eps));
    # 1/max(sqrt(a),eps) == rsqrt(max(a, eps^2))  -> EUP, no VPU divide.
    inv1 = lax.rsqrt(jnp.maximum(n1sq, EPS * EPS))
    inv2 = lax.rsqrt(jnp.maximum(n2sq, EPS * EPS))
    out_ref[...] = dot * inv1 * inv2                       # lane-dense store


def cos_sim_block(x, weight, bias):
    """Forward of CosSimBlock.

    x: (B, SHOT_NUM, D); weight: (SIM_CHANNEL, 4*D); bias: (SIM_CHANNEL,).
    Returns cosine_similarity(lin(p1), lin(p2)) with shape (B,), float32.
    """
    B, S, D = x.shape
    assert S == SHOT_NUM
    f_full = SHOT_NUM * D
    two_c = 2 * SIM_CHANNEL

    # Contiguous flatten (free). The halves are split AFTER the matmul at the
    # lane-aligned column 128, never on the x feature axis.
    x_flat = x.reshape(B, f_full)

    # Block-diagonal weight diag(Wᵀ, Wᵀ): one (8D, 256) matmul instead of two
    # (4D, 128) matmuls. Built once in the wrapper (native dtype preserved).
    w_t = weight.T                                          # (4D, C)
    zeros = jnp.zeros_like(w_t)
    w_bd = jnp.concatenate(
        [jnp.concatenate([w_t, zeros], axis=1),
         jnp.concatenate([zeros, w_t], axis=1)], axis=0)    # (8D, 2C)
    b_bd = jnp.concatenate([bias, bias]).reshape(1, two_c)

    # ---- Batch-tile selection (DMA-time sized, VMEM-budgeted) ---------------
    x_itemsize = jnp.dtype(x.dtype).itemsize
    w_itemsize = jnp.dtype(weight.dtype).itemsize
    row_bytes = f_full * x_itemsize
    w_bytes = f_full * two_c * w_itemsize

    # VMEM left for the two double-buffered x tiles after the (constant-index,
    # double-buffered) weight.
    x_budget = max(2 * 128 * row_bytes, _VMEM_X_BUDGET - 2 * w_bytes)
    tb_vmem = _round_down_mult(x_budget // (2 * row_bytes), 128)
    b128 = _round_up(max(B, 1), 128)
    # Guarantee >= 2 grid steps whenever the batch allows it (v7x dual-TC +
    # DMA/compute pipelining); TB is always a multiple of 128 (sublane + lane
    # alignment for the x block and the lane-dense output block).
    tb_half = 128 if b128 <= 128 else _round_down_mult(b128 // 2, 128)
    TB = max(128, min(_TB_MAX, tb_vmem, tb_half))
    B_pad = _round_up(max(B, 1), TB)

    if B_pad != B:
        x_flat = jnp.pad(x_flat, ((0, B_pad - B), (0, 0)))  # zero rows -> sliced off below

    # Explicit VMEM limit from the actual footprint (independent of the
    # 16/32/32 MiB default scoped limits on v5e/v6e/v7x).
    # NOTE: for very large D (f_full >~ 8K f32) a contraction-axis grid would be
    # needed to keep the resident weight small; not required for this module.
    interm_bytes = 6 * TB * two_c * 4                       # f32 v / vt / temps
    needed = (2 * TB * row_bytes + 2 * w_bytes + 2 * two_c * 4
              + 2 * TB * 4 + interm_bytes + (2 << 20))
    vmem_limit = int(min(_VMEM_LIMIT_CAP, max(needed, 24 << 20)))

    out = pl.pallas_call(
        _cos_sim_kernel,
        out_shape=jax.ShapeDtypeStruct((1, B_pad), jnp.float32),
        grid_spec=pltpu.PrefetchScalarGridSpec(
            num_scalar_prefetch=0,
            grid=(B_pad // TB,),
            in_specs=[
                pl.BlockSpec((TB, f_full), lambda i: (i, 0)),
                pl.BlockSpec((f_full, two_c), lambda i: (0, 0)),
                pl.BlockSpec((1, two_c), lambda i: (0, 0)),
            ],
            out_specs=pl.BlockSpec((1, TB), lambda i: (0, i)),
        ),
        compiler_params=pltpu.CompilerParams(
            dimension_semantics=("parallel",),
            vmem_limit_bytes=vmem_limit),
    )(x_flat, w_bd, b_bd)

    return out.reshape(B_pad)[:B]


def _reference(x, weight, bias):
    B, S, D = x.shape
    half = SHOT_NUM // 2
    p1 = x[:, :half, :].reshape(B, -1).astype(jnp.float32)
    p2 = x[:, half:, :].reshape(B, -1).astype(jnp.float32)
    w = weight.astype(jnp.float32)
    b = bias.astype(jnp.float32)
    v1 = p1 @ w.T + b
    v2 = p2 @ w.T + b
    dot = jnp.sum(v1 * v2, axis=1)
    n1 = jnp.maximum(jnp.linalg.norm(v1, axis=1), EPS)
    n2 = jnp.maximum(jnp.linalg.norm(v2, axis=1), EPS)
    return dot / (n1 * n2)


if __name__ == "__main__":
    key = jax.random.PRNGKey(0)
    kx, kw, kb, kx2 = jax.random.split(key, 4)

    B, D = 2, 32                            # small shapes; in_features = 4*D = 128
    fan_in = (SHOT_NUM // 2) * D
    bound = 1.0 / (fan_in ** 0.5)

    # Use bf16-exact f32 values so the check is insensitive to the MXU's
    # f32-matmul pass count (Pallas kernel vs XLA reference).
    def bf16_exact(a):
        return a.astype(jnp.bfloat16).astype(jnp.float32)

    x = bf16_exact(jax.random.normal(kx, (B, SHOT_NUM, D), dtype=jnp.float32))
    weight = bf16_exact(jax.random.uniform(kw, (SIM_CHANNEL, fan_in),
                                           minval=-bound, maxval=bound,
                                           dtype=jnp.float32))
    bias = bf16_exact(jax.random.uniform(kb, (SIM_CHANNEL,),
                                         minval=-bound, maxval=bound,
                                         dtype=jnp.float32))

    out = cos_sim_block(x, weight, bias)
    jax.block_until_ready(out)
    ref = _reference(x, weight, bias)
    assert out.shape == (B,), out.shape
    assert jnp.allclose(out, ref, atol=1e-4, rtol=1e-4), (out, ref)

    # Exercise the multi-tile (grid >= 2) + batch-padding path.
    B2 = 260
    x2 = bf16_exact(jax.random.normal(kx2, (B2, SHOT_NUM, D), dtype=jnp.float32))
    out2 = cos_sim_block(x2, weight, bias)
    jax.block_until_ready(out2)
    ref2 = _reference(x2, weight, bias)
    assert out2.shape == (B2,), out2.shape
    assert jnp.allclose(out2, ref2, atol=1e-4, rtol=1e-4), (out2, ref2)

    print("KERNEL_OK")
</pallas_src>

<mosaic_0001>
module attributes {stable_mosaic.version = 11 : i64} {
  func.func @_cos_sim_kernel(%arg0: i32, %arg1: memref<128x256xf32, #tpu.memory_space<vmem>>, %arg2: memref<256x256xf32, #tpu.memory_space<vmem>>, %arg3: memref<1x256xf32, #tpu.memory_space<vmem>>, %arg4: memref<1x128xf32, #tpu.memory_space<vmem>>) attributes {dimension_semantics = [#tpu.dimension_semantics<parallel>], iteration_bounds = array<i64: 1>, scalar_prefetch = 0 : i64, scratch_operands = 0 : i64, tpu.core_type = #tpu.core_type<tc>, window_params = [{transform_indices = @transform_0, window_bounds = array<i64: 128, 256>}, {pipeline_mode = #tpu.pipeline_mode<synchronous>, transform_indices = @transform_1, window_bounds = array<i64: 256, 256>}, {pipeline_mode = #tpu.pipeline_mode<synchronous>, transform_indices = @transform_2, window_bounds = array<i64: 1, 256>}, {transform_indices = @transform_3, window_bounds = array<i64: 1, 128>}]} {
    %c0 = arith.constant 0 : index
    %c0_0 = arith.constant 0 : index
    %0 = vector.load %arg1[%c0, %c0_0] : memref<128x256xf32, #tpu.memory_space<vmem>>, vector<128x256xf32>
    %c0_1 = arith.constant 0 : index
    %c0_2 = arith.constant 0 : index
    %1 = vector.load %arg2[%c0_1, %c0_2] : memref<256x256xf32, #tpu.memory_space<vmem>>, vector<256x256xf32>
    %cst = arith.constant dense<0.000000e+00> : vector<128x256xf32>
    %2 = tpu.matmul %0, %1, %cst {dimension_numbers = #tpu.dot_dimension_numbers<[1], [0], [0], [1], [0, 0, 1, 1], [], []>} : vector<128x256xf32>, vector<256x256xf32>, vector<128x256xf32> -> vector<128x256xf32>
    %c0_3 = arith.constant 0 : index
    %c0_4 = arith.constant 0 : index
    %3 = vector.load %arg3[%c0_3, %c0_4] : memref<1x256xf32, #tpu.memory_space<vmem>>, vector<1x256xf32>
    %4 = vector.broadcast %3 : vector<1x256xf32> to vector<128x256xf32>
    %5 = arith.addf %2, %4 : vector<128x256xf32>
    %6 = tpu.transpose %5, [1, 0] : vector<128x256xf32> -> vector<256x128xf32>
    %7 = vector.extract_strided_slice %6 {offsets = [0, 0], sizes = [128, 128], strides = [1, 1]} : vector<256x128xf32> to vector<128x128xf32>
    %8 = vector.extract_strided_slice %6 {offsets = [128, 0], sizes = [128, 128], strides = [1, 1]} : vector<256x128xf32> to vector<128x128xf32>
    %9 = arith.mulf %7, %8 : vector<128x128xf32>
    %cst_5 = arith.constant dense<0.000000e+00> : vector<128xf32>
    %10 = vector.multi_reduction <add>, %9, %cst_5 [0] : vector<128x128xf32> to vector<128xf32>
    %11 = vector.shape_cast %10 : vector<128xf32> to vector<1x128xf32>
    %12 = arith.mulf %7, %7 : vector<128x128xf32>
    %cst_6 = arith.constant dense<0.000000e+00> : vector<128xf32>
    %13 = vector.multi_reduction <add>, %12, %cst_6 [0] : vector<128x128xf32> to vector<128xf32>
    %14 = vector.shape_cast %13 : vector<128xf32> to vector<1x128xf32>
    %15 = arith.mulf %8, %8 : vector<128x128xf32>
    %cst_7 = arith.constant dense<0.000000e+00> : vector<128xf32>
    %16 = vector.multi_reduction <add>, %15, %cst_7 [0] : vector<128x128xf32> to vector<128xf32>
    %17 = vector.shape_cast %16 : vector<128xf32> to vector<1x128xf32>
    %cst_8 = arith.constant 1.000000e-16 : f32
    %18 = vector.broadcast %cst_8 : f32 to vector<1x128xf32>
    %19 = arith.maximumf %14, %18 : vector<1x128xf32>
    %20 = math.rsqrt %19 : vector<1x128xf32>
    %cst_9 = arith.constant 1.000000e-16 : f32
    %21 = vector.broadcast %cst_9 : f32 to vector<1x128xf32>
    %22 = arith.maximumf %17, %21 : vector<1x128xf32>
    %23 = math.rsqrt %22 : vector<1x128xf32>
    %24 = arith.mulf %11, %20 : vector<1x128xf32>
    %25 = arith.mulf %24, %23 : vector<1x128xf32>
    %c0_10 = arith.constant 0 : index
    %c0_11 = arith.constant 0 : index
    %26 = vector.load %arg4[%c0_10, %c0_11] : memref<1x128xf32, #tpu.memory_space<vmem>>, vector<1x128xf32>
    tpu.vector_store %arg4[%c0_10, %c0_11], %25 {strides = array<i32>} : memref<1x128xf32, #tpu.memory_space<vmem>>, vector<1x128xf32>,
    return
  }
  func.func @transform_0(%arg0: i32) -> (i32, i32) {
    %c0_i32 = arith.constant 0 : i32
    %c0_i32_0 = arith.constant 0 : i32
    return %arg0, %c0_i32 : i32, i32
  }
  func.func @transform_1(%arg0: i32) -> (i32, i32) {
    %c0_i32 = arith.constant 0 : i32
    %c0_i32_0 = arith.constant 0 : i32
    %c0_i32_1 = arith.constant 0 : i32
    return %c0_i32, %c0_i32_0 : i32, i32
  }
  func.func @transform_2(%arg0: i32) -> (i32, i32) {
    %c0_i32 = arith.constant 0 : i32
    %c0_i32_0 = arith.constant 0 : i32
    %c0_i32_1 = arith.constant 0 : i32
    return %c0_i32, %c0_i32_0 : i32, i32
  }
  func.func @transform_3(%arg0: i32) -> (i32, i32) {
    %c0_i32 = arith.constant 0 : i32
    %c0_i32_0 = arith.constant 0 : i32
    return %c0_i32, %arg0 : i32, i32
  }
}

</mosaic_0001>

<llo_original>
// kernel: tpu_custom_call.1
$region0: #{tpu_custom_call.1}
  #allocation0 [shape = 'u32[]', space=smem, size = 0x4, offset = 0x4, fixed_abs, tag = 'smem constant byte address 0x4 - core index']
  #allocation1 [shape = 'u32[144,128]{1,0:T(1,128)}', space=vmem, size = 0x12000, scoped, tag = 'internal scratch']
  %s0 = inlined_call_operand.hbm [shape: f32[128,256], index: 0, kind: input, shape index: {}]
  %s1 = inlined_call_operand.hbm [shape: f32[256,256], index: 1, kind: input, shape index: {}]
  %s2 = inlined_call_operand.vmem [shape: f32[1,256], index: 2, kind: input, shape index: {}]
  %s3 = inlined_call_operand.hbm [shape: f32[1,128], index: 3, kind: output, shape index: {}]
  %s4 = sld [smem:[#allocation0]]
  $region30: #{tpu_custom_call.1} parent=0
    _
  %s6 = ssub.s32 1, %s4
  %s7 = scalar_select 0, %s6, %s4
  $region1: #{tpu_custom_call.1} parent=0
    #allocation2 [shape = 'u8[131072]{0}', space=vmem, size = 0x20000, scoped, tag = 'input window, operand 0, single buffered']
    #allocation3 [shape = 's32[1]{0}', space=sflag, size = 0x4, scoped, tag = 'scoped memory for tpu_custom_call.1']
    #allocation4 [shape = 's32[1]{0}', space=sflag, size = 0x4, scoped, tag = 'scoped memory for tpu_custom_call.1']
    #allocation5 [shape = 'u8[262144]{0}', space=vmem, size = 0x40000, scoped, tag = 'input window, operand 1, single buffered']
    #allocation6 [shape = 's32[1]{0}', space=sflag, size = 0x4, scoped, tag = 'scoped memory for tpu_custom_call.1']
    #allocation7 [shape = 'u8[512]{0}', space=vmem, size = 0x400, scoped, tag = 'output window, operand 0, single buffered']
    %8 = vsyncpa [#allocation3], 0
    %9 = vsyncpa [#allocation6], 0
    %10 = vsyncpa [#allocation4], 0
    // Predicated region
    $region2: #{tpu_custom_call.1} parent=1 // pred_check
      _
    $region3: #{tpu_custom_call.1} parent=1 // pred_check_branch
      %12 = sbr.rel (0) target = $region5
    $region4: #{tpu_custom_call.1} parent=1 // pred_region
      %s14 = ssub.s32 4096, 4096
      %15 = vsyncadd [#allocation3], %s14
      %s16 = sshll.u32 [#allocation2], 4
      %s17 = int_to_ptr.vmem [resolvable:$true] %s16
      %22 = dma.hbm_to_vmem [thread:$0]  %s0, 4096, %s17, [#allocation3], 256, 256, 16
    $region5: #{tpu_custom_call.1} parent=1 // pred_fallthru
      _
    // Predicated region
    $region6: #{tpu_custom_call.1} parent=1 // pred_check
      _
    $region7: #{tpu_custom_call.1} parent=1 // pred_check_branch
      %24 = sbr.rel (0) target = $region9
    $region8: #{tpu_custom_call.1} parent=1 // pred_region
      %s26 = ssub.s32 8192, 8192
      %27 = vsyncadd [#allocation6], %s26
      %s28 = sshll.u32 [#allocation5], 4
      %s29 = int_to_ptr.vmem [resolvable:$true] %s28
      %34 = dma.hbm_to_vmem [thread:$0]  %s1, 8192, %s29, [#allocation6], 256, 256, 16
    $region9: #{tpu_custom_call.1} parent=1 // pred_fallthru
      _
    // Predicated region
    $region10: #{tpu_custom_call.1} parent=1 // pred_check
      _
    $region11: #{tpu_custom_call.1} parent=1 // pred_check_branch
      %36 = sbr.rel (0) target = $region13
    $region12: #{tpu_custom_call.1} parent=1 // pred_region
      _
    $region13: #{tpu_custom_call.1} parent=1 // pred_fallthru
      _
    // Predicated region
    $region14: #{tpu_custom_call.1} parent=1 // pred_check
      _
    $region15: #{tpu_custom_call.1} parent=1 // pred_check_branch
      %38 = sbr.rel (0) target = $region17
    $region16: #{tpu_custom_call.1} parent=1 // pred_region
      %39 = dma.done [#allocation3], 4096
    $region17: #{tpu_custom_call.1} parent=1 // pred_fallthru
      _
    // Predicated region
    $region18: #{tpu_custom_call.1} parent=1 // pred_check
      _
    $region19: #{tpu_custom_call.1} parent=1 // pred_check_branch
      %41 = sbr.rel (0) target = $region21
    $region20: #{tpu_custom_call.1} parent=1 // pred_region
      %42 = dma.done [#allocation6], 8192
    $region21: #{tpu_custom_call.1} parent=1 // pred_fallthru
      _
    %v43 = vld [vmem:[#allocation2] sm:$0xff]
    %v44 = vld [vmem:[#allocation2 + $0x8] sm:$0xff]
    %v45 = vld [vmem:[#allocation2 + $0x10] sm:$0xff]
    %v46 = vld [vmem:[#allocation2 + $0x18] sm:$0xff]
    %v47 = vld [vmem:[#allocation2 + $0x20] sm:$0xff]
    %v48 = vld [vmem:[#allocation2 + $0x28] sm:$0xff]
    %v49 = vld [vmem:[#allocation2 + $0x30] sm:$0xff]
    %v50 = vld [vmem:[#allocation2 + $0x38] sm:$0xff]
    %v51 = vld [vmem:[#allocation2 + $0x40] sm:$0xff]
    %v52 = vld [vmem:[#allocation2 + $0x48] sm:$0xff]
    %v53 = vld [vmem:[#allocation2 + $0x50] sm:$0xff]
    %v54 = vld [vmem:[#allocation2 + $0x58] sm:$0xff]
    %v55 = vld [vmem:[#allocation2 + $0x60] sm:$0xff]
    %v56 = vld [vmem:[#allocation2 + $0x68] sm:$0xff]
    %v57 = vld [vmem:[#allocation2 + $0x70] sm:$0xff]
    %v58 = vld [vmem:[#allocation2 + $0x78] sm:$0xff]
    %v59 = vld [vmem:[#allocation2 + $0x80] sm:$0xff]
    %v60 = vld [vmem:[#allocation2 + $0x88] sm:$0xff]
    %v61 = vld [vmem:[#allocation2 + $0x90] sm:$0xff]
    %v62 = vld [vmem:[#allocation2 + $0x98] sm:$0xff]
    %v63 = vld [vmem:[#allocation2 + $0xa0] sm:$0xff]
    %v64 = vld [vmem:[#allocation2 + $0xa8] sm:$0xff]
    %v65 = vld [vmem:[#allocation2 + $0xb0] sm:$0xff]
    %v66 = vld [vmem:[#allocation2 + $0xb8] sm:$0xff]
    %v67 = vld [vmem:[#allocation2 + $0xc0] sm:$0xff]
    %v68 = vld [vmem:[#allocation2 + $0xc8] sm:$0xff]
    %v69 = vld [vmem:[#allocation2 + $0xd0] sm:$0xff]
    %v70 = vld [vmem:[#allocation2 + $0xd8] sm:$0xff]
    %v71 = vld [vmem:[#allocation2 + $0xe0] sm:$0xff]
    %v72 = vld [vmem:[#allocation2 + $0xe8] sm:$0xff]
    %v73 = vld [vmem:[#allocation2 + $0xf0] sm:$0xff]
    %v74 = vld [vmem:[#allocation2 + $0xf8] sm:$0xff]
    %v75 = vld [vmem:[#allocation5] sm:$0xff]
    %v76 = vld [vmem:[#allocation5 + $0x8] sm:$0xff]
    %v77 = vld [vmem:[#allocation5 + $0x10] sm:$0xff]
    %v78 = vld [vmem:[#allocation5 + $0x18] sm:$0xff]
    %v79 = vld [vmem:[#allocation5 + $0x20] sm:$0xff]
    %v80 = vld [vmem:[#allocation5 + $0x28] sm:$0xff]
    %v81 = vld [vmem:[#allocation5 + $0x30] sm:$0xff]
    %v82 = vld [vmem:[#allocation5 + $0x38] sm:$0xff]
    %v83 = vld [vmem:[#allocation5 + $0x40] sm:$0xff]
    %v84 = vld [vmem:[#allocation5 + $0x48] sm:$0xff]
    %v85 = vld [vmem:[#allocation5 + $0x50] sm:$0xff]
    %v86 = vld [vmem:[#allocation5 + $0x58] sm:$0xff]
    %v87 = vld [vmem:[#allocation5 + $0x60] sm:$0xff]
    %v88 = vld [vmem:[#allocation5 + $0x68] sm:$0xff]
    %v89 = vld [vmem:[#allocation5 + $0x70] sm:$0xff]
    %v90 = vld [vmem:[#allocation5 + $0x78] sm:$0xff]
    %v91 = vld [vmem:[#allocation5 + $0x80] sm:$0xff]
    %v92 = vld [vmem:[#allocation5 + $0x88] sm:$0xff]
    %v93 = vld [vmem:[#allocation5 + $0x90] sm:$0xff]
    %v94 = vld [vmem:[#allocation5 + $0x98] sm:$0xff]
    %v95 = vld [vmem:[#allocation5 + $0xa0] sm:$0xff]
    %v96 = vld [vmem:[#allocation5 + $0xa8] sm:$0xff]
    %v97 = vld [vmem:[#allocation5 + $0xb0] sm:$0xff]
    %v98 = vld [vmem:[#allocation5 + $0xb8] sm:$0xff]
    %v99 = vld [vmem:[#allocation5 + $0xc0] sm:$0xff]
    %v100 = vld [vmem:[#allocation5 + $0xc8] sm:$0xff]
    %v101 = vld [vmem:[#allocation5 + $0xd0] sm:$0xff]
    %v102 = vld [vmem:[#allocation5 + $0xd8] sm:$0xff]
    %v103 = vld [vmem:[#allocation5 + $0xe0] sm:$0xff]
    %v104 = vld [vmem:[#allocation5 + $0xe8] sm:$0xff]
    %v105 = vld [vmem:[#allocation5 + $0xf0] sm:$0xff]
    %v106 = vld [vmem:[#allocation5 + $0xf8] sm:$0xff]
    %v107 = vld [vmem:[#allocation5 + $0x100] sm:$0xff]
    %v108 = vld [vmem:[#allocation5 + $0x108] sm:$0xff]
    %v109 = vld [vmem:[#allocation5 + $0x110] sm:$0xff]
    %v110 = vld [vmem:[#allocation5 + $0x118] sm:$0xff]
    %v111 = vld [vmem:[#allocation5 + $0x120] sm:$0xff]
    %v112 = vld [vmem:[#allocation5 + $0x128] sm:$0xff]
    %v113 = vld [vmem:[#allocation5 + $0x130] sm:$0xff]
    %v114 = vld [vmem:[#allocation5 + $0x138] sm:$0xff]
    %v115 = vld [vmem:[#allocation5 + $0x140] sm:$0xff]
    %v116 = vld [vmem:[#allocation5 + $0x148] sm:$0xff]
    %v117 = vld [vmem:[#allocation5 + $0x150] sm:$0xff]
    %v118 = vld [vmem:[#allocation5 + $0x158] sm:$0xff]
    %v119 = vld [vmem:[#allocation5 + $0x160] sm:$0xff]
    %v120 = vld [vmem:[#allocation5 + $0x168] sm:$0xff]
    %v121 = vld [vmem:[#allocation5 + $0x170] sm:$0xff]
    %v122 = vld [vmem:[#allocation5 + $0x178] sm:$0xff]
    %v123 = vld [vmem:[#allocation5 + $0x180] sm:$0xff]
    %v124 = vld [vmem:[#allocation5 + $0x188] sm:$0xff]
    %v125 = vld [vmem:[#allocation5 + $0x190] sm:$0xff]
    %v126 = vld [vmem:[#allocation5 + $0x198] sm:$0xff]
    %v127 = vld [vmem:[#allocation5 + $0x1a0] sm:$0xff]
    %v128 = vld [vmem:[#allocation5 + $0x1a8] sm:$0xff]
    %v129 = vld [vmem:[#allocation5 + $0x1b0] sm:$0xff]
    %v130 = vld [vmem:[#allocation5 + $0x1b8] sm:$0xff]
    %v131 = vld [vmem:[#allocation5 + $0x1c0] sm:$0xff]
    %v132 = vld [vmem:[#allocation5 + $0x1c8] sm:$0xff]
    %v133 = vld [vmem:[#allocation5 + $0x1d0] sm:$0xff]
    %v134 = vld [vmem:[#allocation5 + $0x1d8] sm:$0xff]
    %v135 = vld [vmem:[#allocation5 + $0x1e0] sm:$0xff]
    %v136 = vld [vmem:[#allocation5 + $0x1e8] sm:$0xff]
    %v137 = vld [vmem:[#allocation5 + $0x1f0] sm:$0xff]
    %v138 = vld [vmem:[#allocation5 + $0x1f8] sm:$0xff]
    %v139 = vld [vmem:[%s2] sm:$0x3]
    %v141 = vlaneseq
    %v142 = vshrl.u32 %v141, 7
    %v143 = vsub.s32 0, %v142
    %v144 = vrot.slane %v139, %v143
    %v145 = vlaneseq
    %v146 = vshrl.u32 %v145, 7
    %v147 = vsub.s32 1, %v146
    %v148 = vrot.slane %v139, %v147
    %151 = vmatprep.subr.mxu0 %v76
    %152 = vmatpush1.msra.mxu0 %v75
    %153 = vmatprep.subr.mxu0 %v78
    %154 = vmatpush1.msra.mxu0 %v77
    %155 = vmatprep.subr.mxu0 %v80
    %156 = vmatpush1.msra.mxu0 %v79
    %157 = vmatprep.subr.mxu0 %v82
    %158 = vmatpush1.msra.mxu0 %v81
    %159 = vmatprep.subr.mxu0 %v84
    %160 = vmatpush1.msra.mxu0 %v83
    %161 = vmatprep.subr.mxu0 %v86
    %162 = vmatpush1.msra.mxu0 %v85
    %163 = vmatprep.subr.mxu0 %v88
    %164 = vmatpush1.msra.mxu0 %v87
    %165 = vmatprep.subr.mxu0 %v90
    %166 = vmatpush1.msra.mxu0 %v89
    %167 = vmatprep.subr.mxu0 %v92
    %168 = vmatpush1.msra.mxu0 %v91
    %169 = vmatprep.subr.mxu0 %v94
    %170 = vmatpush1.msra.mxu0 %v93
    %171 = vmatprep.subr.mxu0 %v96
    %172 = vmatpush1.msra.mxu0 %v95
    %173 = vmatprep.subr.mxu0 %v98
    %174 = vmatpush1.msra.mxu0 %v97
    %175 = vmatprep.subr.mxu0 %v100
    %176 = vmatpush1.msra.mxu0 %v99
    %177 = vmatprep.subr.mxu0 %v102
    %178 = vmatpush1.msra.mxu0 %v101
    %179 = vmatprep.subr.mxu0 %v104
    %180 = vmatpush1.msra.mxu0 %v103
    %181 = vmatprep.subr.mxu0 %v106
    %182 = vmatpush1.msra.mxu0 %v105
    %183 = vmatprep.subr.mxu0 %v108
    %184 = vmatpush1.msra.mxu0 %v107
    %185 = vmatprep.subr.mxu0 %v110
    %186 = vmatpush1.msra.mxu0 %v109
    %187 = vmatprep.subr.mxu0 %v112
    %188 = vmatpush1.msra.mxu0 %v111
    %189 = vmatprep.subr.mxu0 %v114
    %190 = vmatpush1.msra.mxu0 %v113
    %191 = vmatprep.subr.mxu0 %v116
    %192 = vmatpush1.msra.mxu0 %v115
    %193 = vmatprep.subr.mxu0 %v118
    %194 = vmatpush1.msra.mxu0 %v117
    %195 = vmatprep.subr.mxu0 %v120
    %196 = vmatpush1.msra.mxu0 %v119
    %197 = vmatprep.subr.mxu0 %v122
    %198 = vmatpush1.msra.mxu0 %v121
    %199 = vmatprep.subr.mxu0 %v124
    %200 = vmatpush1.msra.mxu0 %v123
    %201 = vmatprep.subr.mxu0 %v126
    %202 = vmatpush1.msra.mxu0 %v125
    %203 = vmatprep.subr.mxu0 %v128
    %204 = vmatpush1.msra.mxu0 %v127
    %205 = vmatprep.subr.mxu0 %v130
    %206 = vmatpush1.msra.mxu0 %v129
    %207 = vmatprep.subr.mxu0 %v132
    %208 = vmatpush1.msra.mxu0 %v131
    %209 = vmatprep.subr.mxu0 %v134
    %210 = vmatpush1.msra.mxu0 %v133
    %211 = vmatprep.subr.mxu0 %v136
    %212 = vmatpush1.msra.mxu0 %v135
    %213 = vmatprep.subr.mxu0 %v138
    %214 = vmatpush1.msra.mxu0 %v137
    %215 = vmatprep.mubr.f32.mxu0 %v44
    %216 = vmatmul.mubr.f32.gmra.mrb[0].mxu0 %v43
    %v217 = vpop.f32.mrb[0].mxu0
    %v218 = vadd.f32 %v144, %v217
    %v219 = vpop.f32.mrb[0].mxu0
    %v220 = vadd.f32 %v148, %v219
    %221 = vmatprep.mubr.f32.mxu0 %v46
    %222 = vmatmul.mubr.f32.gmra.mrb[0].mxu0 %v45
    %v223 = vpop.f32.mrb[0].mxu0
    %v224 = vadd.f32 %v144, %v223
    %v225 = vpop.f32.mrb[0].mxu0
    %v226 = vadd.f32 %v148, %v225
    %227 = vmatprep.mubr.f32.mxu0 %v48
    %228 = vmatmul.mubr.f32.gmra.mrb[0].mxu0 %v47
    %v229 = vpop.f32.mrb[0].mxu0
    %v230 = vadd.f32 %v144, %v229
    %v231 = vpop.f32.mrb[0].mxu0
    %v232 = vadd.f32 %v148, %v231
    %233 = vmatprep.mubr.f32.mxu0 %v50
    %234 = vmatmul.mubr.f32.gmra.mrb[0].mxu0 %v49
    %v235 = vpop.f32.mrb[0].mxu0
    %v236 = vadd.f32 %v144, %v235
    %v237 = vpop.f32.mrb[0].mxu0
    %v238 = vadd.f32 %v148, %v237
    %239 = vmatprep.mubr.f32.mxu0 %v52
    %240 = vmatmul.mubr.f32.gmra.mrb[0].mxu0 %v51
    %v241 = vpop.f32.mrb[0].mxu0
    %v242 = vadd.f32 %v144, %v241
    %v243 = vpop.f32.mrb[0].mxu0
    %v244 = vadd.f32 %v148, %v243
    %245 = vmatprep.mubr.f32.mxu0 %v54
    %246 = vmatmul.mubr.f32.gmra.mrb[0].mxu0 %v53
    %v247 = vpop.f32.mrb[0].mxu0
    %v248 = vadd.f32 %v144, %v247
    %v249 = vpop.f32.mrb[0].mxu0
    %v250 = vadd.f32 %v148, %v249
    %251 = vmatprep.mubr.f32.mxu0 %v56
    %252 = vmatmul.mubr.f32.gmra.mrb[0].mxu0 %v55
    %v253 = vpop.f32.mrb[0].mxu0
    %v254 = vadd.f32 %v144, %v253
    %v255 = vpop.f32.mrb[0].mxu0
    %v256 = vadd.f32 %v148, %v255
    %257 = vmatprep.mubr.f32.mxu0 %v58
    %258 = vmatmul.mubr.f32.gmra.mrb[0].mxu0 %v57
    %v259 = vpop.f32.mrb[0].mxu0
    %v260 = vadd.f32 %v144, %v259
    %v261 = vpop.f32.mrb[0].mxu0
    %v262 = vadd.f32 %v148, %v261
    %263 = vmatprep.mubr.f32.mxu0 %v60
    %264 = vmatmul.mubr.f32.gmra.mrb[0].mxu0 %v59
    %v265 = vpop.f32.mrb[0].mxu0
    %v266 = vadd.f32 %v144, %v265
    %v267 = vpop.f32.mrb[0].mxu0
    %v268 = vadd.f32 %v148, %v267
    %269 = vmatprep.mubr.f32.mxu0 %v62
    %270 = vmatmul.mubr.f32.gmra.mrb[0].mxu0 %v61
    %v271 = vpop.f32.mrb[0].mxu0
    %v272 = vadd.f32 %v144, %v271
    %v273 = vpop.f32.mrb[0].mxu0
    %v274 = vadd.f32 %v148, %v273
    %275 = vmatprep.mubr.f32.mxu0 %v64
    %276 = vmatmul.mubr.f32.gmra.mrb[0].mxu0 %v63
    %v277 = vpop.f32.mrb[0].mxu0
    %v278 = vadd.f32 %v144, %v277
    %v279 = vpop.f32.mrb[0].mxu0
    %v280 = vadd.f32 %v148, %v279
    %281 = vmatprep.mubr.f32.mxu0 %v66
    %282 = vmatmul.mubr.f32.gmra.mrb[0].mxu0 %v65
    %v283 = vpop.f32.mrb[0].mxu0
    %v284 = vadd.f32 %v144, %v283
    %v285 = vpop.f32.mrb[0].mxu0
    %v286 = vadd.f32 %v148, %v285
    %287 = vmatprep.mubr.f32.mxu0 %v68
    %288 = vmatmul.mubr.f32.gmra.mrb[0].mxu0 %v67
    %v289 = vpop.f32.mrb[0].mxu0
    %v290 = vadd.f32 %v144, %v289
    %v291 = vpop.f32.mrb[0].mxu0
    %v292 = vadd.f32 %v148, %v291
    %293 = vmatprep.mubr.f32.mxu0 %v70
    %294 = vmatmul.mubr.f32.gmra.mrb[0].mxu0 %v69
    %v295 = vpop.f32.mrb[0].mxu0
    %v296 = vadd.f32 %v144, %v295
    %v297 = vpop.f32.mrb[0].mxu0
    %v298 = vadd.f32 %v148, %v297
    %299 = vmatprep.mubr.f32.mxu0 %v72
    %300 = vmatmul.mubr.f32.gmra.mrb[0].mxu0 %v71
    %v301 = vpop.f32.mrb[0].mxu0
    %v302 = vadd.f32 %v144, %v301
    %v303 = vpop.f32.mrb[0].mxu0
    %v304 = vadd.f32 %v148, %v303
    %305 = vmatprep.mubr.f32.mxu0 %v74
    %306 = vmatmul.mubr.f32.gmra.mrb[0].mxu0 %v73
    %v307 = vpop.f32.mrb[0].mxu0
    %v308 = vadd.f32 %v144, %v307
    %v309 = vpop.f32.mrb[0].mxu0
    %v310 = vadd.f32 %v148, %v309
    %311 = vdwg.mxu0
    %312 = vxpose.xlu0.b32.start [1/16] %v218, 128
    %313 = vxpose.xlu0.b32.cont [2/16] %v224, 128
    %314 = vxpose.xlu0.b32.cont [3/16] %v230, 128
    %315 = vxpose.xlu0.b32.cont [4/16] %v236, 128
    %316 = vxpose.xlu0.b32.cont [5/16] %v242, 128
    %317 = vxpose.xlu0.b32.cont [6/16] %v248, 128
    %318 = vxpose.xlu0.b32.cont [7/16] %v254, 128
    %319 = vxpose.xlu0.b32.cont [8/16] %v260, 128
    %320 = vxpose.xlu0.b32.cont [9/16] %v266, 128
    %321 = vxpose.xlu0.b32.cont [10/16] %v272, 128
    %322 = vxpose.xlu0.b32.cont [11/16] %v278, 128
    %323 = vxpose.xlu0.b32.cont [12/16] %v284, 128
    %324 = vxpose.xlu0.b32.cont [13/16] %v290, 128
    %325 = vxpose.xlu0.b32.cont [14/16] %v296, 128
    %326 = vxpose.xlu0.b32.cont [15/16] %v302, 128
    %327 = vxpose.xlu0.b32.end [16/16] %v308, 128
    %v328 = vpop.trf.xlu0
    %v329 = vpop.trf.xlu0
    %v330 = vpop.trf.xlu0
    %v331 = vpop.trf.xlu0
    %v332 = vpop.trf.xlu0
    %v333 = vpop.trf.xlu0
    %v334 = vpop.trf.xlu0
    %v335 = vpop.trf.xlu0
    %v336 = vpop.trf.xlu0
    %v337 = vpop.trf.xlu0
    %v338 = vpop.trf.xlu0
    %v339 = vpop.trf.xlu0
    %v340 = vpop.trf.xlu0
    %v341 = vpop.trf.xlu0
    %v342 = vpop.trf.xlu0
    %v343 = vpop.trf.xlu0
    %344 = vxpose.xlu0.b32.start [1/16] %v220, 128
    %345 = vxpose.xlu0.b32.cont [2/16] %v226, 128
    %346 = vxpose.xlu0.b32.cont [3/16] %v232, 128
    %347 = vxpose.xlu0.b32.cont [4/16] %v238, 128
    %348 = vxpose.xlu0.b32.cont [5/16] %v244, 128
    %349 = vxpose.xlu0.b32.cont [6/16] %v250, 128
    %350 = vxpose.xlu0.b32.cont [7/16] %v256, 128
    %351 = vxpose.xlu0.b32.cont [8/16] %v262, 128
    %352 = vxpose.xlu0.b32.cont [9/16] %v268, 128
    %353 = vxpose.xlu0.b32.cont [10/16] %v274, 128
    %354 = vxpose.xlu0.b32.cont [11/16] %v280, 128
    %355 = vxpose.xlu0.b32.cont [12/16] %v286, 128
    %356 = vxpose.xlu0.b32.cont [13/16] %v292, 128
    %357 = vxpose.xlu0.b32.cont [14/16] %v298, 128
    %358 = vxpose.xlu0.b32.cont [15/16] %v304, 128
    %359 = vxpose.xlu0.b32.end [16/16] %v310, 128
    %v360 = vpop.trf.xlu0
    %v361 = vpop.trf.xlu0
    %v362 = vpop.trf.xlu0
    %v363 = vpop.trf.xlu0
    %v364 = vpop.trf.xlu0
    %v365 = vpop.trf.xlu0
    %v366 = vpop.trf.xlu0
    %v367 = vpop.trf.xlu0
    %v368 = vpop.trf.xlu0
    %v369 = vpop.trf.xlu0
    %v370 = vpop.trf.xlu0
    %v371 = vpop.trf.xlu0
    %v372 = vpop.trf.xlu0
    %v373 = vpop.trf.xlu0
    %v374 = vpop.trf.xlu0
    %v375 = vpop.trf.xlu0
    %v376 = vmul.f32 %v328, %v360
    %v377 = vmul.f32 %v329, %v361
    %v378 = vmul.f32 %v330, %v362
    %v379 = vmul.f32 %v331, %v363
    %v380 = vmul.f32 %v332, %v364
    %v381 = vmul.f32 %v333, %v365
    %v382 = vmul.f32 %v334, %v366
    %v383 = vmul.f32 %v335, %v367
    %v384 = vmul.f32 %v336, %v368
    %v385 = vmul.f32 %v337, %v369
    %v386 = vmul.f32 %v338, %v370
    %v387 = vmul.f32 %v339, %v371
    %v388 = vmul.f32 %v340, %v372
    %v389 = vmul.f32 %v341, %v373
    %v390 = vmul.f32 %v342, %v374
    %v391 = vmul.f32 %v343, %v375
    %v392 = vadd.f32 %v376, %v377
    %v393 = vadd.f32 %v392, %v378
    %v394 = vadd.f32 %v393, %v379
    %v395 = vadd.f32 %v394, %v380
    %v396 = vadd.f32 %v395, %v381
    %v397 = vadd.f32 %v396, %v382
    %v398 = vadd.f32 %v397, %v383
    %v399 = vadd.f32 %v398, %v384
    %v400 = vadd.f32 %v399, %v385
    %v401 = vadd.f32 %v400, %v386
    %v402 = vadd.f32 %v401, %v387
    %v403 = vadd.f32 %v402, %v388
    %v404 = vadd.f32 %v403, %v389
    %v405 = vadd.f32 %v404, %v390
    %v406 = vadd.f32 %v405, %v391
    %v407 = vrot.slane %v406, 4
    %v408 = vadd.f32 %v406, %v407
    %v409 = vrot.slane %v408, 2
    %v410 = vadd.f32 %v408, %v409
    %v411 = vrot.slane %v410, 1
    %v412 = vadd.f32 %v410, %v411
    %v413 = vmul.f32 %v328, %v328
    %v414 = vmul.f32 %v329, %v329
    %v415 = vmul.f32 %v330, %v330
    %v416 = vmul.f32 %v331, %v331
    %v417 = vmul.f32 %v332, %v332
    %v418 = vmul.f32 %v333, %v333
    %v419 = vmul.f32 %v334, %v334
    %v420 = vmul.f32 %v335, %v335
    %v421 = vmul.f32 %v336, %v336
    %v422 = vmul.f32 %v337, %v337
    %v423 = vmul.f32 %v338, %v338
    %v424 = vmul.f32 %v339, %v339
    %v425 = vmul.f32 %v340, %v340
    %v426 = vmul.f32 %v341, %v341
    %v427 = vmul.f32 %v342, %v342
    %v428 = vmul.f32 %v343, %v343
    %v429 = vadd.f32 %v413, %v414
    %v430 = vadd.f32 %v429, %v415
    %v431 = vadd.f32 %v430, %v416
    %v432 = vadd.f32 %v431, %v417
    %v433 = vadd.f32 %v432, %v418
    %v434 = vadd.f32 %v433, %v419
    %v435 = vadd.f32 %v434, %v420
    %v436 = vadd.f32 %v435, %v421
    %v437 = vadd.f32 %v436, %v422
    %v438 = vadd.f32 %v437, %v423
    %v439 = vadd.f32 %v438, %v424
    %v440 = vadd.f32 %v439, %v425
    %v441 = vadd.f32 %v440, %v426
    %v442 = vadd.f32 %v441, %v427
    %v443 = vadd.f32 %v442, %v428
    %v444 = vrot.slane %v443, 4
    %v445 = vadd.f32 %v443, %v444
    %v446 = vrot.slane %v445, 2
    %v447 = vadd.f32 %v445, %v446
    %v448 = vrot.slane %v447, 1
    %v449 = vadd.f32 %v447, %v448
    %v450 = vmul.f32 %v360, %v360
    %v451 = vmul.f32 %v361, %v361
    %v452 = vmul.f32 %v362, %v362
    %v453 = vmul.f32 %v363, %v363
    %v454 = vmul.f32 %v364, %v364
    %v455 = vmul.f32 %v365, %v365
    %v456 = vmul.f32 %v366, %v366
    %v457 = vmul.f32 %v367, %v367
    %v458 = vmul.f32 %v368, %v368
    %v459 = vmul.f32 %v369, %v369
    %v460 = vmul.f32 %v370, %v370
    %v461 = vmul.f32 %v371, %v371
    %v462 = vmul.f32 %v372, %v372
    %v463 = vmul.f32 %v373, %v373
    %v464 = vmul.f32 %v374, %v374
    %v465 = vmul.f32 %v375, %v375
    %v466 = vadd.f32 %v450, %v451
    %v467 = vadd.f32 %v466, %v452
    %v468 = vadd.f32 %v467, %v453
    %v469 = vadd.f32 %v468, %v454
    %v470 = vadd.f32 %v469, %v455
    %v471 = vadd.f32 %v470, %v456
    %v472 = vadd.f32 %v471, %v457
    %v473 = vadd.f32 %v472, %v458
    %v474 = vadd.f32 %v473, %v459
    %v475 = vadd.f32 %v474, %v460
    %v476 = vadd.f32 %v475, %v461
    %v477 = vadd.f32 %v476, %v462
    %v478 = vadd.f32 %v477, %v463
    %v479 = vadd.f32 %v478, %v464
    %v480 = vadd.f32 %v479, %v465
    %v481 = vrot.slane %v480, 4
    %v482 = vadd.f32 %v480, %v481
    %v483 = vrot.slane %v482, 2
    %v484 = vadd.f32 %v482, %v483
    %v485 = vrot.slane %v484, 1
    %v486 = vadd.f32 %v484, %v485
    %v487 = vmax.f32 %v449, 1e-16
    %v488 = vrsqrt.pop %v487
    %v489 = vmax.f32 %v486, 1e-16
    %v490 = vrsqrt.pop %v489
    %v491 = vmul.f32 %v412, %v488
    %v492 = vmul.f32 %v491, %v490
    %493 = vst [vmem:[#allocation7] sm:$0x1] %v492
    // Predicated region
    $region22: #{tpu_custom_call.1} parent=1 // pred_check
      _
    $region23: #{tpu_custom_call.1} parent=1 // pred_check_branch
      %495 = sbr.rel (0) target = $region25
    $region24: #{tpu_custom_call.1} parent=1 // pred_region
      %s497 = ssub.s32 16, 16
      %498 = vsyncadd [#allocation4], %s497
      %s500 = sshll.u32 [#allocation7], 4
      %s501 = int_to_ptr.vmem [resolvable:$true] %s500
      %503 = dma.vmem_to_hbm [thread:$0]  %s501, 16, %s3, [#allocation4]
    $region25: #{tpu_custom_call.1} parent=1 // pred_fallthru
      _
    // Predicated region
    $region26: #{tpu_custom_call.1} parent=1 // pred_check
      _
    $region27: #{tpu_custom_call.1} parent=1 // pred_check_branch
      %505 = sbr.rel (0) target = $region29
    $region28: #{tpu_custom_call.1} parent=1 // pred_region
      %506 = dma.done [#allocation4], 16
    $region29: #{tpu_custom_call.1} parent=1 // pred_fallthru
      _
    %507 = vsyncpa [#allocation3], 1
    %508 = vsyncpa [#allocation6], 1
    %509 = vsyncpa [#allocation4], 1

</llo_original>
